<compile_context>
chip_gen: v6e
topology: v6e:2x2x1
jax: 0.10.0
libtpu: 0.0.40
codegen_flags: <defaults>
</compile_context>

<pallas_src>
import functools
import math

import jax
import jax.numpy as jnp
from jax.experimental import pallas as pl
from jax.experimental.pallas import tpu as pltpu


LANE = 128     # lane width (last dim)
SUBLANE = 16   # bf16 sublane pack (second-to-last dim)


def _round_up(x, m):
    return ((x + m - 1) // m) * m


def _device_info():
    """(tensorcores_per_chip, vmem_budget_bytes) — TPU-generation aware."""
    try:
        kind = jax.devices()[0].device_kind.lower()
    except Exception:  # pragma: no cover - defensive
        kind = ""
    if "v7" in kind:
        # v7x: 64 MiB physical VMEM per TC, 2 TCs per chip. Leave headroom for
        # Mosaic internal scratch / semaphores.
        return 2, 44 * 1024 * 1024
    if "v6" in kind or "v5" in kind:
        # v5e / v6e: 1 TC, 128 MiB VMEM.
        return 1, 100 * 1024 * 1024
    # Unknown generation: assume 2 cores, be conservative on VMEM.
    return 2, 40 * 1024 * 1024


def _pick_block(dim, align, cap):
    """Pick a tile (multiple of `align`) and pad `dim` up to a multiple of it.

    Prefers one big tile covering the whole (minimally padded) dim; otherwise
    uses the cap-sized tile and accepts some padded FLOPs — padding is far
    cheaper than extra grid steps + accumulator read-modify-writes.
    """
    padded_min = _round_up(dim, align)
    if padded_min <= cap:
        return padded_min, padded_min
    tile = (cap // align) * align
    return tile, _round_up(dim, tile)


def _vmem_bytes(bb, bn, bk, in_b, out_b, multi_k):
    # Double-buffered x / w / bias / out tiles (+ f32 accumulator if multi-K).
    need = 2 * (bb * bk * in_b + bk * bn * in_b + bn * 4 + bb * bn * out_b)
    if multi_k:
        need += bb * bn * 4
    return need


def _choose_tiles(B, K, N, in_b, out_b, num_tc, vmem_budget):
    block_b, Bp = _pick_block(B, SUBLANE, 512)
    block_n, Np = _pick_block(N, LANE, 1024)
    block_k, Kp = _pick_block(K, LANE, 2048)

    def fits():
        return _vmem_bytes(block_b, block_n, block_k, in_b, out_b,
                           Kp // block_k > 1) <= vmem_budget

    # Shrink to fit VMEM: batch first, then N, keep the contraction tile big
    # for as long as possible (it is what amortizes the accumulator RMW).
    while not fits():
        if block_b > SUBLANE:
            block_b = max(SUBLANE, (block_b // 2 // SUBLANE) * SUBLANE)
            Bp = _round_up(B, block_b)
        elif block_n > LANE:
            block_n = max(LANE, (block_n // 2 // LANE) * LANE)
            Np = _round_up(N, block_n)
        elif block_k > LANE:
            block_k = max(LANE, (block_k // 2 // LANE) * LANE)
            Kp = _round_up(K, block_k)
        else:
            break

    # Megacore (v7x, 2 TCs): guarantee >=2 blocks along a parallel axis when
    # the shapes allow it, preferring the batch axis, falling back to N.
    if num_tc >= 2 and (Bp // block_b) * (Np // block_n) < 2:
        if block_b >= 2 * SUBLANE:
            block_b = _round_up(block_b // 2, SUBLANE)
            Bp = _round_up(B, block_b)
        elif block_n >= 2 * LANE:
            block_n = _round_up(block_n // 2, LANE)
            Np = _round_up(N, block_n)

    return (block_b, Bp), (block_n, Np), (block_k, Kp)


# ----------------------------- kernels --------------------------------------

def _mlp_kernel_single_k(x_ref, w_ref, b_ref, o_ref):
    # x_ref: (TB, Kp) bf16   w_ref: (Kp, TN) bf16 (already W^T layout)
    # b_ref: (1, TN) f32     o_ref: (TB, TN)
    y = jnp.dot(x_ref[...], w_ref[...], preferred_element_type=jnp.float32)
    o_ref[...] = jnp.tanh(y + b_ref[...]).astype(o_ref.dtype)


def _mlp_kernel_multi_k(x_ref, w_ref, b_ref, o_ref, acc_ref):
    # Grid: (batch tiles, N tiles, K tiles); K innermost ("arbitrary").
    k = pl.program_id(2)

    @pl.when(k == 0)
    def _():
        acc_ref[...] = jnp.zeros_like(acc_ref)

    acc_ref[...] += jnp.dot(x_ref[...], w_ref[...],
                            preferred_element_type=jnp.float32)

    @pl.when(k == pl.num_programs(2) - 1)
    def _():
        o_ref[...] = jnp.tanh(acc_ref[...] + b_ref[...]).astype(o_ref.dtype)


# ----------------------------- wrapper --------------------------------------

def mlp_layer(features, weight, bias, *, compute_dtype=jnp.bfloat16):
    """tanh(features @ weight.T + bias).

    features: (B, K); weight: (N, K) PyTorch (out, in) layout; bias: (N,).
    Designed to be called under jax.jit so the one-time weight transpose /
    pad / cast fuses with the rest of the program.
    """
    B, K = features.shape
    N, K2 = weight.shape
    assert K == K2 and bias.shape == (N,)
    out_dtype = features.dtype

    num_tc, vmem_budget = _device_info()
    in_b = jnp.dtype(compute_dtype).itemsize
    out_b = jnp.dtype(out_dtype).itemsize

    (block_b, Bp), (block_n, Np), (block_k, Kp) = _choose_tiles(
        B, K, N, in_b, out_b, num_tc, vmem_budget)
    single_k = (Kp == block_k)

    # One-time layout prep (transpose weight to (K, N); zero-pad; cast).
    # Zero padding on K contributes nothing to the dot; padded B/N rows/cols
    # are sliced off after the call.
    x_p = jnp.pad(features, ((0, Bp - B), (0, Kp - K))).astype(compute_dtype)
    w_p = jnp.pad(weight.T, ((0, Kp - K), (0, Np - N))).astype(compute_dtype)
    b_p = jnp.pad(bias, (0, Np - N)).astype(jnp.float32).reshape(1, Np)

    est = _vmem_bytes(block_b, block_n, block_k, in_b, out_b, not single_k)
    vmem_limit = min(max(int(1.5 * est), 16 * 1024 * 1024), vmem_budget)

    if single_k:
        grid = (Bp // block_b, Np // block_n)
        grid_spec = pltpu.PrefetchScalarGridSpec(
            num_scalar_prefetch=0,
            grid=grid,
            in_specs=[
                pl.BlockSpec((block_b, Kp), lambda i, j: (i, 0)),     # x
                pl.BlockSpec((Kp, block_n), lambda i, j: (0, j)),     # W^T
                pl.BlockSpec((1, block_n), lambda i, j: (0, j)),      # bias
            ],
            out_specs=pl.BlockSpec((block_b, block_n), lambda i, j: (i, j)),
            scratch_shapes=[],
        )
        kernel = _mlp_kernel_single_k
        dim_sem = ("parallel", "parallel")
    else:
        grid = (Bp // block_b, Np // block_n, Kp // block_k)
        grid_spec = pltpu.PrefetchScalarGridSpec(
            num_scalar_prefetch=0,
            grid=grid,
            in_specs=[
                pl.BlockSpec((block_b, block_k), lambda i, j, k: (i, k)),  # x
                pl.BlockSpec((block_k, block_n), lambda i, j, k: (k, j)),  # W^T
                pl.BlockSpec((1, block_n), lambda i, j, k: (0, j)),        # bias
            ],
            out_specs=pl.BlockSpec((block_b, block_n),
                                   lambda i, j, k: (i, j)),
            scratch_shapes=[pltpu.VMEM((block_b, block_n), jnp.float32)],
        )
        kernel = _mlp_kernel_multi_k
        dim_sem = ("parallel", "parallel", "arbitrary")

    out_p = pl.pallas_call(
        kernel,
        out_shape=jax.ShapeDtypeStruct((Bp, Np), out_dtype),
        grid_spec=grid_spec,
        compiler_params=pltpu.CompilerParams(
            dimension_semantics=dim_sem,
            vmem_limit_bytes=vmem_limit,
        ),
    )(x_p, w_p, b_p)

    return out_p[:B, :N]


# ----------------------------- test harness ---------------------------------

def _torch_linear_init(key, out_features, in_features):
    """Deterministic init mimicking nn.Linear defaults."""
    kw, kb = jax.random.split(key)
    bound = 1.0 / math.sqrt(in_features)
    w = jax.random.uniform(kw, (out_features, in_features),
                           minval=-bound, maxval=bound, dtype=jnp.float32)
    b = jax.random.uniform(kb, (out_features,),
                           minval=-bound, maxval=bound, dtype=jnp.float32)
    return w, b


if __name__ == "__main__":
    key = jax.random.PRNGKey(0)
    k_x, k_p = jax.random.split(key)

    batch, hidden = 8, 32  # small shapes consistent with the module
    features = jax.random.normal(k_x, (batch, hidden), dtype=jnp.float32)
    weight, bias = _torch_linear_init(k_p, hidden, hidden)

    # Whole wrapper under one jit: weight transpose/pad/cast fuses with the
    # kernel launch instead of running as separate HBM passes.
    mlp_forward = jax.jit(mlp_layer)

    out = jax.block_until_ready(mlp_forward(features, weight, bias))
    assert out.shape == (batch, hidden)

    # Precision-matched reference: same bf16 matmul inputs, f32 accumulation.
    xb = features.astype(jnp.bfloat16).astype(jnp.float32)
    wb = weight.astype(jnp.bfloat16).astype(jnp.float32)
    ref_matched = jnp.tanh(xb @ wb.T + bias)
    assert jnp.allclose(out, ref_matched, atol=1e-4, rtol=1e-4), \
        "mismatch vs precision-matched reference"

    # Full-f32 module semantics (nn.Linear + nn.Tanh) — loose tol for bf16 matmul.
    ref_f32 = jnp.tanh(features @ weight.T + bias)
    assert jnp.allclose(out, ref_f32, atol=2e-2, rtol=2e-2), \
        "mismatch vs f32 reference"

    print("KERNEL_OK")
</pallas_src>

<mosaic_0001>
module attributes {stable_mosaic.version = 11 : i64} {
  func.func @_mlp_kernel_single_k(%arg0: i32, %arg1: i32, %arg2: memref<16x128xbf16, #tpu.memory_space<vmem>>, %arg3: memref<128x128xbf16, #tpu.memory_space<vmem>>, %arg4: memref<1x128xf32, #tpu.memory_space<vmem>>, %arg5: memref<16x128xf32, #tpu.memory_space<vmem>>) attributes {dimension_semantics = [#tpu.dimension_semantics<parallel>, #tpu.dimension_semantics<parallel>], iteration_bounds = array<i64: 1, 1>, scalar_prefetch = 0 : i64, scratch_operands = 0 : i64, tpu.core_type = #tpu.core_type<tc>, window_params = [{transform_indices = @transform_0, window_bounds = array<i64: 16, 128>}, {transform_indices = @transform_1, window_bounds = array<i64: 128, 128>}, {transform_indices = @transform_2, window_bounds = array<i64: 1, 128>}, {transform_indices = @transform_3, window_bounds = array<i64: 16, 128>}]} {
    %c0 = arith.constant 0 : index
    %c0_0 = arith.constant 0 : index
    %0 = vector.load %arg2[%c0, %c0_0] : memref<16x128xbf16, #tpu.memory_space<vmem>>, vector<16x128xbf16>
    %c0_1 = arith.constant 0 : index
    %c0_2 = arith.constant 0 : index
    %1 = vector.load %arg3[%c0_1, %c0_2] : memref<128x128xbf16, #tpu.memory_space<vmem>>, vector<128x128xbf16>
    %cst = arith.constant dense<0.000000e+00> : vector<16x128xf32>
    %2 = tpu.matmul %0, %1, %cst {dimension_numbers = #tpu.dot_dimension_numbers<[1], [0], [0], [1], [0, 0, 1, 1], [], []>} : vector<16x128xbf16>, vector<128x128xbf16>, vector<16x128xf32> -> vector<16x128xf32>
    %c0_3 = arith.constant 0 : index
    %c0_4 = arith.constant 0 : index
    %3 = vector.load %arg4[%c0_3, %c0_4] : memref<1x128xf32, #tpu.memory_space<vmem>>, vector<1x128xf32>
    %4 = vector.broadcast %3 : vector<1x128xf32> to vector<16x128xf32>
    %5 = arith.addf %2, %4 : vector<16x128xf32>
    %6 = math.tanh %5 : vector<16x128xf32>
    %c0_5 = arith.constant 0 : index
    %c0_6 = arith.constant 0 : index
    %7 = vector.load %arg5[%c0_5, %c0_6] : memref<16x128xf32, #tpu.memory_space<vmem>>, vector<16x128xf32>
    tpu.vector_store %arg5[%c0_5, %c0_6], %6 {strides = array<i32>} : memref<16x128xf32, #tpu.memory_space<vmem>>, vector<16x128xf32>,
    return
  }
  func.func @transform_0(%arg0: i32, %arg1: i32) -> (i32, i32) {
    %c0_i32 = arith.constant 0 : i32
    %c0_i32_0 = arith.constant 0 : i32
    return %arg0, %c0_i32 : i32, i32
  }
  func.func @transform_1(%arg0: i32, %arg1: i32) -> (i32, i32) {
    %c0_i32 = arith.constant 0 : i32
    %c0_i32_0 = arith.constant 0 : i32
    return %c0_i32, %arg1 : i32, i32
  }
  func.func @transform_2(%arg0: i32, %arg1: i32) -> (i32, i32) {
    %c0_i32 = arith.constant 0 : i32
    %c0_i32_0 = arith.constant 0 : i32
    return %c0_i32, %arg1 : i32, i32
  }
  func.func @transform_3(%arg0: i32, %arg1: i32) -> (i32, i32) {
    %c0_i32 = arith.constant 0 : i32
    return %arg0, %arg1 : i32, i32
  }
}

</mosaic_0001>

<llo_original>
// kernel: mlp_layer.1
$region0: #{mlp_layer.1}
  #allocation0 [shape = 'u32[]', space=smem, size = 0x4, offset = 0x4, fixed_abs, tag = 'smem constant byte address 0x4 - core index']
  #allocation1 [shape = 'u32[144,128]{1,0:T(1,128)}', space=vmem, size = 0x12000, scoped, tag = 'internal scratch']
  %s0 = inlined_call_operand.vmem [shape: bf16[16,128], index: 0, kind: input, shape index: {}]
  %s1 = inlined_call_operand.vmem [shape: bf16[128,128], index: 1, kind: input, shape index: {}]
  %s2 = inlined_call_operand.vmem [shape: f32[1,128], index: 2, kind: input, shape index: {}]
  %s3 = inlined_call_operand.vmem [shape: f32[16,128], index: 3, kind: output, shape index: {}]
  %s4 = sld [smem:[#allocation0]]
  $region22: #{mlp_layer.1} parent=0
    _
  %s6 = ssub.s32 1, %s4
  %s7 = scalar_select 0, %s6, %s4
  // Predicated region
  $region2: #{mlp_layer.1} parent=0 // pred_check
    _
  $region3: #{mlp_layer.1} parent=0 // pred_check_branch
    %9 = sbr.rel (0) target = $region5
  $region4: #{mlp_layer.1} parent=0 // pred_region
    _
  $region5: #{mlp_layer.1} parent=0 // pred_fallthru
    _
  // Predicated region
  $region6: #{mlp_layer.1} parent=0 // pred_check
    _
  $region7: #{mlp_layer.1} parent=0 // pred_check_branch
    %11 = sbr.rel (0) target = $region9
  $region8: #{mlp_layer.1} parent=0 // pred_region
    _
  $region9: #{mlp_layer.1} parent=0 // pred_fallthru
    _
  // Predicated region
  $region10: #{mlp_layer.1} parent=0 // pred_check
    _
  $region11: #{mlp_layer.1} parent=0 // pred_check_branch
    %13 = sbr.rel (0) target = $region13
  $region12: #{mlp_layer.1} parent=0 // pred_region
    _
  $region13: #{mlp_layer.1} parent=0 // pred_fallthru
    _
  %v15 = vld [vmem:[%s0] sm:$0xf]
  %v16 = vld [vmem:[%s0 + $0x4] sm:$0xf]
  %v17 = vld [vmem:[%s1] sm:$0xf]
  %v18 = vld [vmem:[%s1 + $0x4] sm:$0xf]
  %v19 = vld [vmem:[%s1 + $0x8] sm:$0xf]
  %v20 = vld [vmem:[%s1 + $0xc] sm:$0xf]
  %v21 = vld [vmem:[%s1 + $0x10] sm:$0xf]
  %v22 = vld [vmem:[%s1 + $0x14] sm:$0xf]
  %v23 = vld [vmem:[%s1 + $0x18] sm:$0xf]
  %v24 = vld [vmem:[%s1 + $0x1c] sm:$0xf]
  %v25 = vld [vmem:[%s1 + $0x20] sm:$0xf]
  %v26 = vld [vmem:[%s1 + $0x24] sm:$0xf]
  %v27 = vld [vmem:[%s1 + $0x28] sm:$0xf]
  %v28 = vld [vmem:[%s1 + $0x2c] sm:$0xf]
  %v29 = vld [vmem:[%s1 + $0x30] sm:$0xf]
  %v30 = vld [vmem:[%s1 + $0x34] sm:$0xf]
  %v31 = vld [vmem:[%s1 + $0x38] sm:$0xf]
  %v32 = vld [vmem:[%s1 + $0x3c] sm:$0xf]
  %v33 = vld [vmem:[%s2] sm:$0x1]
  %v35 = vlaneseq
  %v36 = vshrl.u32 %v35, 7
  %v37 = vsub.s32 0, %v36
  %v38 = vrot.slane %v33, %v37
  %v42 = vunpack.c.l.b16 %v15
  %v43 = vunpack.c.l.b16 %v16
  %v44 = vpack.c.b16 %v43, %v42
  %v62 = vunpack.c.l.b16 %v17
  %v63 = vunpack.c.l.b16 %v18
  %v64 = vunpack.c.l.b16 %v19
  %v65 = vunpack.c.l.b16 %v20
  %v66 = vunpack.c.l.b16 %v21
  %v67 = vunpack.c.l.b16 %v22
  %v68 = vunpack.c.l.b16 %v23
  %v69 = vunpack.c.l.b16 %v24
  %v70 = vunpack.c.l.b16 %v25
  %v71 = vunpack.c.l.b16 %v26
  %v72 = vunpack.c.l.b16 %v27
  %v73 = vunpack.c.l.b16 %v28
  %v74 = vunpack.c.l.b16 %v29
  %v75 = vunpack.c.l.b16 %v30
  %v76 = vunpack.c.l.b16 %v31
  %v77 = vunpack.c.l.b16 %v32
  %v78 = vpack.c.b16 %v63, %v62
  %v79 = vpack.c.b16 %v65, %v64
  %v80 = vpack.c.b16 %v67, %v66
  %v81 = vpack.c.b16 %v69, %v68
  %v82 = vpack.c.b16 %v71, %v70
  %v83 = vpack.c.b16 %v73, %v72
  %v84 = vpack.c.b16 %v75, %v74
  %v85 = vpack.c.b16 %v77, %v76
  %94 = vmatprep.subr.bf16.mxu0 0
  %95 = vmatpush1.bf16.msra.mxu0 %v85
  %96 = vmatprep.subr.bf16.mxu0 0
  %97 = vmatpush1.bf16.msra.mxu0 %v84
  %98 = vmatprep.subr.bf16.mxu0 0
  %99 = vmatpush1.bf16.msra.mxu0 %v83
  %100 = vmatprep.subr.bf16.mxu0 0
  %101 = vmatpush1.bf16.msra.mxu0 %v82
  %102 = vmatprep.subr.bf16.mxu0 0
  %103 = vmatpush1.bf16.msra.mxu0 %v81
  %104 = vmatprep.subr.bf16.mxu0 0
  %105 = vmatpush1.bf16.msra.mxu0 %v80
  %106 = vmatprep.subr.bf16.mxu0 0
  %107 = vmatpush1.bf16.msra.mxu0 %v79
  %108 = vmatprep.subr.bf16.mxu0 0
  %109 = vmatpush1.bf16.msra.mxu0 %v78
  %110 = vmatprep.subr.bf16.mxu0 0
  %111 = vmatpush2.bf16.msra.mxu0 0
  %112 = vmatprep.subr.bf16.mxu0 0
  %113 = vmatpush2.bf16.msra.mxu0 0
  %114 = vmatprep.subr.bf16.mxu0 0
  %115 = vmatpush2.bf16.msra.mxu0 0
  %116 = vmatprep.subr.bf16.mxu0 0
  %117 = vmatpush2.bf16.msra.mxu0 0
  %118 = vmatprep.subr.bf16.mxu0 0
  %119 = vmatpush2.bf16.msra.mxu0 0
  %120 = vmatprep.subr.bf16.mxu0 0
  %121 = vmatpush2.bf16.msra.mxu0 0
  %122 = vmatprep.subr.bf16.mxu0 0
  %123 = vmatpush2.bf16.msra.mxu0 0
  %124 = vmatprep.subr.bf16.mxu0 0
  %125 = vmatpush2.bf16.msra.mxu0 0
  %126 = vmatprep.mubr.bf16.mxu0 0
  %127 = vmatmul.mubr.bf16.gmra.mxu0 %v44
  %v128 = vpop.f32.mrf.mxu0
  %v129 = vadd.f32 %v38, %v128
  %v130 = vpop.f32.mrf.mxu0
  %v131 = vpop.f32.mrf.mxu0
  %v132 = vadd.f32 %v38, %v131
  %v133 = vpop.f32.mrf.mxu0
  %134 = vdwg.mxu0
  %v135 = vtanh.pop %v129
  %v136 = vtanh.pop %v132
  %137 = vst [vmem:[%s3] sm:$0xff] %v135
  %138 = vst [vmem:[%s3 + $0x8] sm:$0xff] %v136
  // Predicated region
  $region14: #{mlp_layer.1} parent=0 // pred_check
    _
  $region15: #{mlp_layer.1} parent=0 // pred_check_branch
    %140 = sbr.rel (0) target = $region17
  $region16: #{mlp_layer.1} parent=0 // pred_region
    _
  $region17: #{mlp_layer.1} parent=0 // pred_fallthru
    _
  // Predicated region
  $region18: #{mlp_layer.1} parent=0 // pred_check
    _
  $region19: #{mlp_layer.1} parent=0 // pred_check_branch
    %142 = sbr.rel (0) target = $region21
  $region20: #{mlp_layer.1} parent=0 // pred_region
    _
  $region21: #{mlp_layer.1} parent=0 // pred_fallthru
    _

</llo_original>
